<compile_context>
chip_gen: v5e
topology: v5e:2x2
jax: 0.10.0
libtpu: 0.0.40
codegen_flags: <defaults>
</compile_context>

<pallas_src>
import functools

import jax
import jax.numpy as jnp
from jax.experimental import pallas as pl
from jax.experimental.pallas import tpu as pltpu


# ------------------------------- Pallas kernel ------------------------------

def _self_attention_kernel(x_ref, wq_ref, bq_ref, wk_ref, bk_ref,
                           wv_ref, bv_ref, wo_ref, bo_ref, o_ref,
                           k_ref, v_ref, oh_ref, *, num_heads, compute_dtype):
    """One (batch, query-tile) grid step of multi-head self-attention."""
    qi = pl.program_id(1)
    cdt = compute_dtype
    tq = o_ref.shape[1]
    embed = o_ref.shape[2]
    head_dim = embed // num_heads

    # --- K/V projection for the whole sequence, once per batch, cached. -----
    @pl.when(qi == 0)
    def _():
        x_full = x_ref[0]                                            # (N, C) bf16
        k = jnp.dot(x_full, wk_ref[...],
                    preferred_element_type=jnp.float32) + bk_ref[...]
        v = jnp.dot(x_full, wv_ref[...],
                    preferred_element_type=jnp.float32) + bv_ref[...]
        k_ref[...] = k.astype(k_ref.dtype)
        v_ref[...] = v.astype(v_ref.dtype)

    # --- Q projection for this tile (sliced from the resident x block). -----
    q_start = pl.multiple_of(qi * tq, tq)
    xq = x_ref[0, pl.ds(q_start, tq), :]                             # (TQ, C) bf16
    # 1/sqrt(head_dim) is folded into wq/bq in the wrapper.
    q = (jnp.dot(xq, wq_ref[...], preferred_element_type=jnp.float32)
         + bq_ref[...]).astype(cdt)                                  # (TQ, C)

    # --- Per-head scaled-dot-product attention (unrolled, static slices). ---
    # Head outputs are written into a lane-contiguous VMEM slab so the output
    # projection below is a single lane-dense (TQ, C) @ (C, C) GEMM.
    for h in range(num_heads):
        lo = h * head_dim
        qh = q[:, lo:lo + head_dim]                                  # (TQ, D)
        kh = k_ref[:, lo:lo + head_dim]                              # (N,  D)
        vh = v_ref[:, lo:lo + head_dim]                              # (N,  D)

        # scores = q_h @ k_h^T (contract over D; no explicit transpose).
        s = jax.lax.dot_general(qh, kh, (((1,), (1,)), ((), ())),
                                preferred_element_type=jnp.float32)  # (TQ, N) f32

        # Softmax in f32 (max-subtracted); divide goes to the EUP.
        s = s - jnp.max(s, axis=-1, keepdims=True)
        p = jnp.exp(s)
        p = p * pl.reciprocal(jnp.sum(p, axis=-1, keepdims=True), approx=True)

        oh = jnp.dot(p.astype(cdt), vh,
                     preferred_element_type=jnp.float32)             # (TQ, D) f32
        oh_ref[:, lo:lo + head_dim] = oh.astype(oh_ref.dtype)

    # --- Output projection: one lane-dense GEMM over all heads. -------------
    out = jnp.dot(oh_ref[...], wo_ref[...],
                  preferred_element_type=jnp.float32) + bo_ref[...]  # (TQ, C) f32
    o_ref[0] = out.astype(o_ref.dtype)


# --------------------------------- wrapper ----------------------------------

def self_attention(x, params, *, num_heads, tile_q=None,
                   compute_dtype=jnp.bfloat16):
    B, N, C = x.shape
    out_dtype = x.dtype
    assert C % num_heads == 0
    D = C // num_heads
    if tile_q is None:
        tile_q = N if N <= 256 else 256
    assert N % tile_q == 0
    assert tile_q == N or tile_q % 8 == 0

    scale = float(D) ** -0.5
    cdt = compute_dtype

    # Pre-cast activations/weights to the MXU compute dtype once, outside the
    # kernel; fold the attention scale into Wq / bq.  Biases stay f32.
    xc = x.astype(cdt)
    wq = (params["wq"] * scale).astype(cdt)
    bq = (params["bq"] * scale).astype(jnp.float32).reshape(1, C)
    wk = params["wk"].astype(cdt)
    bk = params["bk"].astype(jnp.float32).reshape(1, C)
    wv = params["wv"].astype(cdt)
    bv = params["bv"].astype(jnp.float32).reshape(1, C)
    wo = params["wo"].astype(cdt)
    bo = params["bo"].astype(jnp.float32).reshape(1, C)

    grid = (B, N // tile_q)

    const2 = lambda b, qi: (0, 0)                 # weights resident for all steps
    in_specs = [
        pl.BlockSpec((1, N, C), lambda b, qi: (b, 0, 0)),   # x (resident per batch)
        pl.BlockSpec((C, C), const2),  # Wq (scale folded in)
        pl.BlockSpec((1, C), const2),  # bq
        pl.BlockSpec((C, C), const2),  # Wk
        pl.BlockSpec((1, C), const2),  # bk
        pl.BlockSpec((C, C), const2),  # Wv
        pl.BlockSpec((1, C), const2),  # bv
        pl.BlockSpec((C, C), const2),  # Wo
        pl.BlockSpec((1, C), const2),  # bo
    ]
    out_spec = pl.BlockSpec((1, tile_q, C), lambda b, qi: (b, qi, 0))

    # Per-generation VMEM limit: 3/4 of physical (<=100 MiB); 48 MiB fallback
    # is safe on v7x's 64 MiB per-TensorCore VMEM.
    try:
        cap = pltpu.get_tpu_info().vmem_capacity_bytes
        vmem_limit = min(int(cap) * 3 // 4, 100 * 1024 * 1024)
    except Exception:
        vmem_limit = 48 * 1024 * 1024

    kernel = functools.partial(_self_attention_kernel,
                               num_heads=num_heads, compute_dtype=cdt)
    return pl.pallas_call(
        kernel,
        out_shape=jax.ShapeDtypeStruct((B, N, C), out_dtype),
        grid=grid,
        in_specs=in_specs,
        out_specs=out_spec,
        scratch_shapes=[pltpu.VMEM((N, C), cdt),        # cached projected K
                        pltpu.VMEM((N, C), cdt),        # cached projected V
                        pltpu.VMEM((tile_q, C), cdt)],  # per-head output slab
        compiler_params=pltpu.CompilerParams(
            dimension_semantics=("parallel", "arbitrary"),
            vmem_limit_bytes=vmem_limit),
    )(xc, wq, bq, wk, bk, wv, bv, wo, bo)


# ---------------------------- pure-JAX reference ----------------------------

def self_attention_reference(x, p, num_heads):
    B, N, C = x.shape
    D = C // num_heads
    q = x @ p["wq"] + p["bq"]
    k = x @ p["wk"] + p["bk"]
    v = x @ p["wv"] + p["bv"]
    q = q.reshape(B, N, num_heads, D).transpose(0, 2, 1, 3)
    k = k.reshape(B, N, num_heads, D).transpose(0, 2, 1, 3)
    v = v.reshape(B, N, num_heads, D).transpose(0, 2, 1, 3)
    s = jnp.einsum("bhqd,bhkd->bhqk", q, k) * (D ** -0.5)
    attn = jax.nn.softmax(s, axis=-1)
    o = jnp.einsum("bhqk,bhkd->bhqd", attn, v)
    o = o.transpose(0, 2, 1, 3).reshape(B, N, C)
    return o @ p["wo"] + p["bo"]


# --------------------------- deterministic params ---------------------------

def init_params(key, embed_dim):
    ks = jax.random.split(key, 8)
    s = 0.05

    def lin(kw, kb, din, dout):
        return (jax.random.normal(kw, (din, dout), jnp.float32) * s,
                jax.random.normal(kb, (dout,), jnp.float32) * s)

    wq, bq = lin(ks[0], ks[1], embed_dim, embed_dim)
    wk, bk = lin(ks[2], ks[3], embed_dim, embed_dim)
    wv, bv = lin(ks[4], ks[5], embed_dim, embed_dim)
    wo, bo = lin(ks[6], ks[7], embed_dim, embed_dim)
    return dict(wq=wq, bq=bq, wk=wk, bk=bk, wv=wv, bv=bv, wo=wo, bo=bo)


# ----------------------------------- main ------------------------------------

if __name__ == "__main__":
    B, N, E, H = 2, 8, 32, 4            # batch, seq, embed, heads
    key = jax.random.PRNGKey(0)
    kx, kp = jax.random.split(key)
    x = jax.random.normal(kx, (B, N, E), jnp.float32)
    params = init_params(kp, E)

    y = self_attention(x, params, num_heads=H)
    y = jax.block_until_ready(y)

    y_ref = self_attention_reference(x, params, H)
    assert y.shape == (B, N, E) and y.dtype == jnp.float32
    assert bool(jnp.all(jnp.isfinite(y)))
    assert bool(jnp.allclose(y, y_ref, rtol=3e-2, atol=3e-2)), \
        float(jnp.max(jnp.abs(y - y_ref)))
    print("KERNEL_OK")
</pallas_src>

<mosaic_0001>
module attributes {stable_mosaic.version = 11 : i64} {
  func.func @_self_attention_kernel(%arg0: i32, %arg1: i32, %arg2: memref<1x8x32xbf16, #tpu.memory_space<vmem>>, %arg3: memref<32x32xbf16, #tpu.memory_space<vmem>>, %arg4: memref<1x32xf32, #tpu.memory_space<vmem>>, %arg5: memref<32x32xbf16, #tpu.memory_space<vmem>>, %arg6: memref<1x32xf32, #tpu.memory_space<vmem>>, %arg7: memref<32x32xbf16, #tpu.memory_space<vmem>>, %arg8: memref<1x32xf32, #tpu.memory_space<vmem>>, %arg9: memref<32x32xbf16, #tpu.memory_space<vmem>>, %arg10: memref<1x32xf32, #tpu.memory_space<vmem>>, %arg11: memref<1x8x32xf32, #tpu.memory_space<vmem>>, %arg12: memref<8x32xbf16, #tpu.memory_space<vmem>>, %arg13: memref<8x32xbf16, #tpu.memory_space<vmem>>, %arg14: memref<8x32xbf16, #tpu.memory_space<vmem>>) attributes {dimension_semantics = [#tpu.dimension_semantics<parallel>, #tpu.dimension_semantics<arbitrary>], iteration_bounds = array<i64: 2, 1>, scalar_prefetch = 0 : i64, scratch_operands = 3 : i64, tpu.core_type = #tpu.core_type<tc>, window_params = [{transform_indices = @transform_0, window_bounds = array<i64: 1, 8, 32>}, {pipeline_mode = #tpu.pipeline_mode<synchronous>, transform_indices = @transform_1, window_bounds = array<i64: 32, 32>}, {pipeline_mode = #tpu.pipeline_mode<synchronous>, transform_indices = @transform_2, window_bounds = array<i64: 1, 32>}, {pipeline_mode = #tpu.pipeline_mode<synchronous>, transform_indices = @transform_3, window_bounds = array<i64: 32, 32>}, {pipeline_mode = #tpu.pipeline_mode<synchronous>, transform_indices = @transform_4, window_bounds = array<i64: 1, 32>}, {pipeline_mode = #tpu.pipeline_mode<synchronous>, transform_indices = @transform_5, window_bounds = array<i64: 32, 32>}, {pipeline_mode = #tpu.pipeline_mode<synchronous>, transform_indices = @transform_6, window_bounds = array<i64: 1, 32>}, {pipeline_mode = #tpu.pipeline_mode<synchronous>, transform_indices = @transform_7, window_bounds = array<i64: 32, 32>}, {pipeline_mode = #tpu.pipeline_mode<synchronous>, transform_indices = @transform_8, window_bounds = array<i64: 1, 32>}, {transform_indices = @transform_9, window_bounds = array<i64: 1, 8, 32>}]} {
    %c0_i32 = arith.constant 0 : i32
    %0 = arith.cmpi eq, %arg1, %c0_i32 : i32
    %1 = arith.extui %0 : i1 to i32
    %c0_i32_0 = arith.constant 0 : i32
    %2 = arith.cmpi ne, %1, %c0_i32_0 : i32
    scf.if %2 {
      %c0_53 = arith.constant 0 : index
      %c0_54 = arith.constant 0 : index
      %c0_55 = arith.constant 0 : index
      %95 = vector.load %arg2[%c0_53, %c0_54, %c0_55] : memref<1x8x32xbf16, #tpu.memory_space<vmem>>, vector<1x8x32xbf16>
      %96 = vector.shape_cast %95 : vector<1x8x32xbf16> to vector<8x32xbf16>
      %c0_56 = arith.constant 0 : index
      %c0_57 = arith.constant 0 : index
      %97 = vector.load %arg5[%c0_56, %c0_57] : memref<32x32xbf16, #tpu.memory_space<vmem>>, vector<32x32xbf16>
      %cst_58 = arith.constant dense<0.000000e+00> : vector<8x32xf32>
      %98 = tpu.matmul %96, %97, %cst_58 {dimension_numbers = #tpu.dot_dimension_numbers<[1], [0], [0], [1], [0, 0, 1, 1], [], []>} : vector<8x32xbf16>, vector<32x32xbf16>, vector<8x32xf32> -> vector<8x32xf32>
      %c0_59 = arith.constant 0 : index
      %c0_60 = arith.constant 0 : index
      %99 = vector.load %arg6[%c0_59, %c0_60] : memref<1x32xf32, #tpu.memory_space<vmem>>, vector<1x32xf32>
      %100 = vector.broadcast %99 : vector<1x32xf32> to vector<8x32xf32>
      %101 = arith.addf %98, %100 : vector<8x32xf32>
      %c0_61 = arith.constant 0 : index
      %c0_62 = arith.constant 0 : index
      %102 = vector.load %arg7[%c0_61, %c0_62] : memref<32x32xbf16, #tpu.memory_space<vmem>>, vector<32x32xbf16>
      %cst_63 = arith.constant dense<0.000000e+00> : vector<8x32xf32>
      %103 = tpu.matmul %96, %102, %cst_63 {dimension_numbers = #tpu.dot_dimension_numbers<[1], [0], [0], [1], [0, 0, 1, 1], [], []>} : vector<8x32xbf16>, vector<32x32xbf16>, vector<8x32xf32> -> vector<8x32xf32>
      %c0_64 = arith.constant 0 : index
      %c0_65 = arith.constant 0 : index
      %104 = vector.load %arg8[%c0_64, %c0_65] : memref<1x32xf32, #tpu.memory_space<vmem>>, vector<1x32xf32>
      %105 = vector.broadcast %104 : vector<1x32xf32> to vector<8x32xf32>
      %106 = arith.addf %103, %105 : vector<8x32xf32>
      %107 = arith.truncf %101 : vector<8x32xf32> to vector<8x32xbf16>
      %c0_66 = arith.constant 0 : index
      %c0_67 = arith.constant 0 : index
      %108 = vector.load %arg12[%c0_66, %c0_67] : memref<8x32xbf16, #tpu.memory_space<vmem>>, vector<8x32xbf16>
      tpu.vector_store %arg12[%c0_66, %c0_67], %107 {strides = array<i32>} : memref<8x32xbf16, #tpu.memory_space<vmem>>, vector<8x32xbf16>,
      %109 = arith.truncf %106 : vector<8x32xf32> to vector<8x32xbf16>
      %c0_68 = arith.constant 0 : index
      %c0_69 = arith.constant 0 : index
      %110 = vector.load %arg13[%c0_68, %c0_69] : memref<8x32xbf16, #tpu.memory_space<vmem>>, vector<8x32xbf16>
      tpu.vector_store %arg13[%c0_68, %c0_69], %109 {strides = array<i32>} : memref<8x32xbf16, #tpu.memory_space<vmem>>, vector<8x32xbf16>,
    } else {
    }
    %c8_i32 = arith.constant 8 : i32
    %3 = arith.muli %arg1, %c8_i32 : i32
    %4 = tpu.assume_multiple %3, 8 : i32
    %c0 = arith.constant 0 : index
    %5 = arith.index_cast %4 : i32 to index
    %c0_1 = arith.constant 0 : index
    %6 = vector.load %arg2[%c0, %5, %c0_1] : memref<1x8x32xbf16, #tpu.memory_space<vmem>>, vector<1x8x32xbf16>
    %7 = vector.shape_cast %6 : vector<1x8x32xbf16> to vector<8x32xbf16>
    %c0_2 = arith.constant 0 : index
    %c0_3 = arith.constant 0 : index
    %8 = vector.load %arg3[%c0_2, %c0_3] : memref<32x32xbf16, #tpu.memory_space<vmem>>, vector<32x32xbf16>
    %cst = arith.constant dense<0.000000e+00> : vector<8x32xf32>
    %9 = tpu.matmul %7, %8, %cst {dimension_numbers = #tpu.dot_dimension_numbers<[1], [0], [0], [1], [0, 0, 1, 1], [], []>} : vector<8x32xbf16>, vector<32x32xbf16>, vector<8x32xf32> -> vector<8x32xf32>
    %c0_4 = arith.constant 0 : index
    %c0_5 = arith.constant 0 : index
    %10 = vector.load %arg4[%c0_4, %c0_5] : memref<1x32xf32, #tpu.memory_space<vmem>>, vector<1x32xf32>
    %11 = vector.broadcast %10 : vector<1x32xf32> to vector<8x32xf32>
    %12 = arith.addf %9, %11 : vector<8x32xf32>
    %13 = arith.truncf %12 : vector<8x32xf32> to vector<8x32xbf16>
    %14 = vector.extract_strided_slice %13 {offsets = [0, 0], sizes = [8, 8], strides = [1, 1]} : vector<8x32xbf16> to vector<8x8xbf16>
    %c0_6 = arith.constant 0 : index
    %c0_7 = arith.constant 0 : index
    %15 = vector.load %arg12[%c0_6, %c0_7] : memref<8x32xbf16, #tpu.memory_space<vmem>>, vector<8x8xbf16>
    %c0_8 = arith.constant 0 : index
    %c0_9 = arith.constant 0 : index
    %16 = vector.load %arg13[%c0_8, %c0_9] : memref<8x32xbf16, #tpu.memory_space<vmem>>, vector<8x8xbf16>
    %cst_10 = arith.constant dense<0.000000e+00> : vector<8x8xf32>
    %17 = tpu.matmul %14, %15, %cst_10 {dimension_numbers = #tpu.dot_dimension_numbers<[1], [1], [0], [0], [0, 0, 1, 0], [], []>} : vector<8x8xbf16>, vector<8x8xbf16>, vector<8x8xf32> -> vector<8x8xf32>
    %cst_11 = arith.constant dense<0xFF800000> : vector<8xf32>
    %18 = vector.multi_reduction <maximumf>, %17, %cst_11 [1] : vector<8x8xf32> to vector<8xf32>
    %19 = vector.shape_cast %18 : vector<8xf32> to vector<8x1xf32>
    %20 = vector.broadcast %19 : vector<8x1xf32> to vector<8x8xf32>
    %21 = arith.subf %17, %20 : vector<8x8xf32>
    %22 = math.exp %21 : vector<8x8xf32>
    %cst_12 = arith.constant dense<0.000000e+00> : vector<8xf32>
    %23 = vector.multi_reduction <add>, %22, %cst_12 [1] : vector<8x8xf32> to vector<8xf32>
    %24 = vector.shape_cast %23 : vector<8xf32> to vector<8x1xf32>
    %25 = tpu.reciprocal %24 {approx = true} : vector<8x1xf32> -> vector<8x1xf32>
    %26 = vector.broadcast %25 : vector<8x1xf32> to vector<8x8xf32>
    %27 = arith.mulf %22, %26 : vector<8x8xf32>
    %28 = arith.truncf %27 : vector<8x8xf32> to vector<8x8xbf16>
    %cst_13 = arith.constant dense<0.000000e+00> : vector<8x8xf32>
    %29 = tpu.matmul %28, %16, %cst_13 {dimension_numbers = #tpu.dot_dimension_numbers<[1], [0], [0], [1], [0, 0, 1, 1], [], []>} : vector<8x8xbf16>, vector<8x8xbf16>, vector<8x8xf32> -> vector<8x8xf32>
    %30 = arith.truncf %29 : vector<8x8xf32> to vector<8x8xbf16>
    %c0_14 = arith.constant 0 : index
    %c0_15 = arith.constant 0 : index
    %31 = vector.load %arg14[%c0_14, %c0_15] : memref<8x32xbf16, #tpu.memory_space<vmem>>, vector<8x8xbf16>
    tpu.vector_store %arg14[%c0_14, %c0_15], %30 {strides = array<i32>} : memref<8x32xbf16, #tpu.memory_space<vmem>>, vector<8x8xbf16>,
    %32 = vector.extract_strided_slice %13 {offsets = [0, 8], sizes = [8, 8], strides = [1, 1]} : vector<8x32xbf16> to vector<8x8xbf16>
    %c0_16 = arith.constant 0 : index
    %c8 = arith.constant 8 : index
    %33 = vector.load %arg12[%c0_16, %c8] : memref<8x32xbf16, #tpu.memory_space<vmem>>, vector<8x8xbf16>
    %c0_17 = arith.constant 0 : index
    %c8_18 = arith.constant 8 : index
    %34 = vector.load %arg13[%c0_17, %c8_18] : memref<8x32xbf16, #tpu.memory_space<vmem>>, vector<8x8xbf16>
    %cst_19 = arith.constant dense<0.000000e+00> : vector<8x8xf32>
    %35 = tpu.matmul %32, %33, %cst_19 {dimension_numbers = #tpu.dot_dimension_numbers<[1], [1], [0], [0], [0, 0, 1, 0], [], []>} : vector<8x8xbf16>, vector<8x8xbf16>, vector<8x8xf32> -> vector<8x8xf32>
    %cst_20 = arith.constant dense<0xFF800000> : vector<8xf32>
    %36 = vector.multi_reduction <maximumf>, %35, %cst_20 [1] : vector<8x8xf32> to vector<8xf32>
    %37 = vector.shape_cast %36 : vector<8xf32> to vector<8x1xf32>
    %38 = vector.broadcast %37 : vector<8x1xf32> to vector<8x8xf32>
    %39 = arith.subf %35, %38 : vector<8x8xf32>
    %40 = math.exp %39 : vector<8x8xf32>
    %cst_21 = arith.constant dense<0.000000e+00> : vector<8xf32>
    %41 = vector.multi_reduction <add>, %40, %cst_21 [1] : vector<8x8xf32> to vector<8xf32>
    %42 = vector.shape_cast %41 : vector<8xf32> to vector<8x1xf32>
    %43 = tpu.reciprocal %42 {approx = true} : vector<8x1xf32> -> vector<8x1xf32>
    %44 = vector.broadcast %43 : vector<8x1xf32> to vector<8x8xf32>
    %45 = arith.mulf %40, %44 : vector<8x8xf32>
    %46 = arith.truncf %45 : vector<8x8xf32> to vector<8x8xbf16>
    %cst_22 = arith.constant dense<0.000000e+00> : vector<8x8xf32>
    %47 = tpu.matmul %46, %34, %cst_22 {dimension_numbers = #tpu.dot_dimension_numbers<[1], [0], [0], [1], [0, 0, 1, 1], [], []>} : vector<8x8xbf16>, vector<8x8xbf16>, vector<8x8xf32> -> vector<8x8xf32>
    %48 = arith.truncf %47 : vector<8x8xf32> to vector<8x8xbf16>
    %c0_23 = arith.constant 0 : index
    %c8_24 = arith.constant 8 : index
    %49 = vector.load %arg14[%c0_23, %c8_24] : memref<8x32xbf16, #tpu.memory_space<vmem>>, vector<8x8xbf16>
    tpu.vector_store %arg14[%c0_23, %c8_24], %48 {strides = array<i32>} : memref<8x32xbf16, #tpu.memory_space<vmem>>, vector<8x8xbf16>,
    %50 = vector.extract_strided_slice %13 {offsets = [0, 16], sizes = [8, 8], strides = [1, 1]} : vector<8x32xbf16> to vector<8x8xbf16>
    %c0_25 = arith.constant 0 : index
    %c16 = arith.constant 16 : index
    %51 = vector.load %arg12[%c0_25, %c16] : memref<8x32xbf16, #tpu.memory_space<vmem>>, vector<8x8xbf16>
    %c0_26 = arith.constant 0 : index
    %c16_27 = arith.constant 16 : index
    %52 = vector.load %arg13[%c0_26, %c16_27] : memref<8x32xbf16, #tpu.memory_space<vmem>>, vector<8x8xbf16>
    %cst_28 = arith.constant dense<0.000000e+00> : vector<8x8xf32>
    %53 = tpu.matmul %50, %51, %cst_28 {dimension_numbers = #tpu.dot_dimension_numbers<[1], [1], [0], [0], [0, 0, 1, 0], [], []>} : vector<8x8xbf16>, vector<8x8xbf16>, vector<8x8xf32> -> vector<8x8xf32>
    %cst_29 = arith.constant dense<0xFF800000> : vector<8xf32>
    %54 = vector.multi_reduction <maximumf>, %53, %cst_29 [1] : vector<8x8xf32> to vector<8xf32>
    %55 = vector.shape_cast %54 : vector<8xf32> to vector<8x1xf32>
    %56 = vector.broadcast %55 : vector<8x1xf32> to vector<8x8xf32>
    %57 = arith.subf %53, %56 : vector<8x8xf32>
    %58 = math.exp %57 : vector<8x8xf32>
    %cst_30 = arith.constant dense<0.000000e+00> : vector<8xf32>
    %59 = vector.multi_reduction <add>, %58, %cst_30 [1] : vector<8x8xf32> to vector<8xf32>
    %60 = vector.shape_cast %59 : vector<8xf32> to vector<8x1xf32>
    %61 = tpu.reciprocal %60 {approx = true} : vector<8x1xf32> -> vector<8x1xf32>
    %62 = vector.broadcast %61 : vector<8x1xf32> to vector<8x8xf32>
    %63 = arith.mulf %58, %62 : vector<8x8xf32>
    %64 = arith.truncf %63 : vector<8x8xf32> to vector<8x8xbf16>
    %cst_31 = arith.constant dense<0.000000e+00> : vector<8x8xf32>
    %65 = tpu.matmul %64, %52, %cst_31 {dimension_numbers = #tpu.dot_dimension_numbers<[1], [0], [0], [1], [0, 0, 1, 1], [], []>} : vector<8x8xbf16>, vector<8x8xbf16>, vector<8x8xf32> -> vector<8x8xf32>
    %66 = arith.truncf %65 : vector<8x8xf32> to vector<8x8xbf16>
    %c0_32 = arith.constant 0 : index
    %c16_33 = arith.constant 16 : index
    %67 = vector.load %arg14[%c0_32, %c16_33] : memref<8x32xbf16, #tpu.memory_space<vmem>>, vector<8x8xbf16>
    tpu.vector_store %arg14[%c0_32, %c16_33], %66 {strides = array<i32>} : memref<8x32xbf16, #tpu.memory_space<vmem>>, vector<8x8xbf16>,
    %68 = vector.extract_strided_slice %13 {offsets = [0, 24], sizes = [8, 8], strides = [1, 1]} : vector<8x32xbf16> to vector<8x8xbf16>
    %c0_34 = arith.constant 0 : index
    %c24 = arith.constant 24 : index
    %69 = vector.load %arg12[%c0_34, %c24] : memref<8x32xbf16, #tpu.memory_space<vmem>>, vector<8x8xbf16>
    %c0_35 = arith.constant 0 : index
    %c24_36 = arith.constant 24 : index
    %70 = vector.load %arg13[%c0_35, %c24_36] : memref<8x32xbf16, #tpu.memory_space<vmem>>, vector<8x8xbf16>
    %cst_37 = arith.constant dense<0.000000e+00> : vector<8x8xf32>
    %71 = tpu.matmul %68, %69, %cst_37 {dimension_numbers = #tpu.dot_dimension_numbers<[1], [1], [0], [0], [0, 0, 1, 0], [], []>} : vector<8x8xbf16>, vector<8x8xbf16>, vector<8x8xf32> -> vector<8x8xf32>
    %cst_38 = arith.constant dense<0xFF800000> : vector<8xf32>
    %72 = vector.multi_reduction <maximumf>, %71, %cst_38 [1] : vector<8x8xf32> to vector<8xf32>
    %73 = vector.shape_cast %72 : vector<8xf32> to vector<8x1xf32>
    %74 = vector.broadcast %73 : vector<8x1xf32> to vector<8x8xf32>
    %75 = arith.subf %71, %74 : vector<8x8xf32>
    %76 = math.exp %75 : vector<8x8xf32>
    %cst_39 = arith.constant dense<0.000000e+00> : vector<8xf32>
    %77 = vector.multi_reduction <add>, %76, %cst_39 [1] : vector<8x8xf32> to vector<8xf32>
    %78 = vector.shape_cast %77 : vector<8xf32> to vector<8x1xf32>
    %79 = tpu.reciprocal %78 {approx = true} : vector<8x1xf32> -> vector<8x1xf32>
    %80 = vector.broadcast %79 : vector<8x1xf32> to vector<8x8xf32>
    %81 = arith.mulf %76, %80 : vector<8x8xf32>
    %82 = arith.truncf %81 : vector<8x8xf32> to vector<8x8xbf16>
    %cst_40 = arith.constant dense<0.000000e+00> : vector<8x8xf32>
    %83 = tpu.matmul %82, %70, %cst_40 {dimension_numbers = #tpu.dot_dimension_numbers<[1], [0], [0], [1], [0, 0, 1, 1], [], []>} : vector<8x8xbf16>, vector<8x8xbf16>, vector<8x8xf32> -> vector<8x8xf32>
    %84 = arith.truncf %83 : vector<8x8xf32> to vector<8x8xbf16>
    %c0_41 = arith.constant 0 : index
    %c24_42 = arith.constant 24 : index
    %85 = vector.load %arg14[%c0_41, %c24_42] : memref<8x32xbf16, #tpu.memory_space<vmem>>, vector<8x8xbf16>
    tpu.vector_store %arg14[%c0_41, %c24_42], %84 {strides = array<i32>} : memref<8x32xbf16, #tpu.memory_space<vmem>>, vector<8x8xbf16>,
    %c0_43 = arith.constant 0 : index
    %c0_44 = arith.constant 0 : index
    %86 = vector.load %arg14[%c0_43, %c0_44] : memref<8x32xbf16, #tpu.memory_space<vmem>>, vector<8x32xbf16>
    %c0_45 = arith.constant 0 : index
    %c0_46 = arith.constant 0 : index
    %87 = vector.load %arg9[%c0_45, %c0_46] : memref<32x32xbf16, #tpu.memory_space<vmem>>, vector<32x32xbf16>
    %cst_47 = arith.constant dense<0.000000e+00> : vector<8x32xf32>
    %88 = tpu.matmul %86, %87, %cst_47 {dimension_numbers = #tpu.dot_dimension_numbers<[1], [0], [0], [1], [0, 0, 1, 1], [], []>} : vector<8x32xbf16>, vector<32x32xbf16>, vector<8x32xf32> -> vector<8x32xf32>
    %c0_48 = arith.constant 0 : index
    %c0_49 = arith.constant 0 : index
    %89 = vector.load %arg10[%c0_48, %c0_49] : memref<1x32xf32, #tpu.memory_space<vmem>>, vector<1x32xf32>
    %90 = vector.broadcast %89 : vector<1x32xf32> to vector<8x32xf32>
    %91 = arith.addf %88, %90 : vector<8x32xf32>
    %c0_50 = arith.constant 0 : index
    %c0_51 = arith.constant 0 : index
    %c0_52 = arith.constant 0 : index
    %92 = vector.load %arg11[%c0_50, %c0_51, %c0_52] : memref<1x8x32xf32, #tpu.memory_space<vmem>>, vector<1x8x32xf32>
    %93 = vector.shape_cast %92 : vector<1x8x32xf32> to vector<8x32xf32>
    %94 = vector.shape_cast %91 : vector<8x32xf32> to vector<1x8x32xf32>
    tpu.vector_store %arg11[%c0_50, %c0_51, %c0_52], %94 {strides = array<i32>} : memref<1x8x32xf32, #tpu.memory_space<vmem>>, vector<1x8x32xf32>,
    return
  }
  func.func @transform_0(%arg0: i32, %arg1: i32) -> (i32, i32, i32) {
    %c0_i32 = arith.constant 0 : i32
    %c0_i32_0 = arith.constant 0 : i32
    %c0_i32_1 = arith.constant 0 : i32
    return %arg0, %c0_i32, %c0_i32_0 : i32, i32, i32
  }
  func.func @transform_1(%arg0: i32, %arg1: i32) -> (i32, i32) {
    %c0_i32 = arith.constant 0 : i32
    %c0_i32_0 = arith.constant 0 : i32
    %c0_i32_1 = arith.constant 0 : i32
    return %c0_i32, %c0_i32_0 : i32, i32
  }
  func.func @transform_2(%arg0: i32, %arg1: i32) -> (i32, i32) {
    %c0_i32 = arith.constant 0 : i32
    %c0_i32_0 = arith.constant 0 : i32
    %c0_i32_1 = arith.constant 0 : i32
    return %c0_i32, %c0_i32_0 : i32, i32
  }
  func.func @transform_3(%arg0: i32, %arg1: i32) -> (i32, i32) {
    %c0_i32 = arith.constant 0 : i32
    %c0_i32_0 = arith.constant 0 : i32
    %c0_i32_1 = arith.constant 0 : i32
    return %c0_i32, %c0_i32_0 : i32, i32
  }
  func.func @transform_4(%arg0: i32, %arg1: i32) -> (i32, i32) {
    %c0_i32 = arith.constant 0 : i32
    %c0_i32_0 = arith.constant 0 : i32
    %c0_i32_1 = arith.constant 0 : i32
    return %c0_i32, %c0_i32_0 : i32, i32
  }
  func.func @transform_5(%arg0: i32, %arg1: i32) -> (i32, i32) {
    %c0_i32 = arith.constant 0 : i32
    %c0_i32_0 = arith.constant 0 : i32
    %c0_i32_1 = arith.constant 0 : i32
    return %c0_i32, %c0_i32_0 : i32, i32
  }
  func.func @transform_6(%arg0: i32, %arg1: i32) -> (i32, i32) {
    %c0_i32 = arith.constant 0 : i32
    %c0_i32_0 = arith.constant 0 : i32
    %c0_i32_1 = arith.constant 0 : i32
    return %c0_i32, %c0_i32_0 : i32, i32
  }
  func.func @transform_7(%arg0: i32, %arg1: i32) -> (i32, i32) {
    %c0_i32 = arith.constant 0 : i32
    %c0_i32_0 = arith.constant 0 : i32
    %c0_i32_1 = arith.constant 0 : i32
    return %c0_i32, %c0_i32_0 : i32, i32
  }
  func.func @transform_8(%arg0: i32, %arg1: i32) -> (i32, i32) {
    %c0_i32 = arith.constant 0 : i32
    %c0_i32_0 = arith.constant 0 : i32
    %c0_i32_1 = arith.constant 0 : i32
    return %c0_i32, %c0_i32_0 : i32, i32
  }
  func.func @transform_9(%arg0: i32, %arg1: i32) -> (i32, i32, i32) {
    %c0_i32 = arith.constant 0 : i32
    %c0_i32_0 = arith.constant 0 : i32
    return %arg0, %arg1, %c0_i32 : i32, i32, i32
  }
}

</mosaic_0001>

<llo_original>
// kernel: tpu_custom_call.1
$region0: #{tpu_custom_call.1}
  #allocation0 [shape = 'u32[]', space=smem, size = 0x4, offset = 0x4, fixed_abs, tag = 'smem constant byte address 0x4 - core index']
  #allocation1 [shape = 'u32[72,128]{1,0:T(1,128)}', space=vmem, size = 0x9000, scoped, tag = 'internal scratch']
  #allocation2 [shape = 'bf16[8,32]{1,0:T(8,128)(2,1)}', space=vmem, size = 0x800, scoped, tag = 'scratch operand']
  #allocation3 [shape = 'bf16[8,32]{1,0:T(8,128)(2,1)}', space=vmem, size = 0x800, scoped, tag = 'scratch operand']
  #allocation4 [shape = 'bf16[8,32]{1,0:T(8,128)(2,1)}', space=vmem, size = 0x800, scoped, tag = 'scratch operand']
  %s0 = inlined_call_operand.hbm [shape: bf16[2,8,32], index: 0, kind: input, shape index: {}]
  %s1 = inlined_call_operand.hbm [shape: bf16[32,32], index: 1, kind: input, shape index: {}]
  %s2 = inlined_call_operand.vmem [shape: f32[1,32], index: 2, kind: input, shape index: {}]
  %s3 = inlined_call_operand.hbm [shape: bf16[32,32], index: 3, kind: input, shape index: {}]
  %s4 = inlined_call_operand.vmem [shape: f32[1,32], index: 4, kind: input, shape index: {}]
  %s5 = inlined_call_operand.hbm [shape: bf16[32,32], index: 5, kind: input, shape index: {}]
  %s6 = inlined_call_operand.vmem [shape: f32[1,32], index: 6, kind: input, shape index: {}]
  %s7 = inlined_call_operand.hbm [shape: bf16[32,32], index: 7, kind: input, shape index: {}]
  %s8 = inlined_call_operand.vmem [shape: f32[1,32], index: 8, kind: input, shape index: {}]
  %s9 = inlined_call_operand.hbm [shape: f32[2,8,32], index: 9, kind: output, shape index: {}]
  %s10 = sld [smem:[#allocation0]]
  $region93: #{tpu_custom_call.1} parent=0
    _
  %s12 = ssub.s32 1, %s10
  %s13 = scalar_select 0, %s12, %s10
  $region1: #{tpu_custom_call.1} parent=0
    #allocation5 [shape = 'u8[4096]{0}', space=vmem, size = 0x1000, scoped, tag = 'input window, operand 0']
    #allocation6 [shape = 's32[2]{0}', space=sflag, size = 0x8, scoped, tag = 'scoped memory for tpu_custom_call.1']
    #allocation7 [shape = 's32[2]{0}', space=sflag, size = 0x8, scoped, tag = 'scoped memory for tpu_custom_call.1']
    #allocation8 [shape = 'u8[8192]{0}', space=vmem, size = 0x2000, scoped, tag = 'input window, operand 1, single buffered']
    #allocation9 [shape = 's32[1]{0}', space=sflag, size = 0x4, scoped, tag = 'scoped memory for tpu_custom_call.1']
    #allocation10 [shape = 'u8[8192]{0}', space=vmem, size = 0x2000, scoped, tag = 'input window, operand 3, single buffered']
    #allocation11 [shape = 'u8[8192]{0}', space=vmem, size = 0x2000, scoped, tag = 'input window, operand 5, single buffered']
    #allocation12 [shape = 's32[1]{0}', space=sflag, size = 0x4, scoped, tag = 'scoped memory for tpu_custom_call.1']
    #allocation13 [shape = 'u8[8192]{0}', space=vmem, size = 0x2000, scoped, tag = 'input window, operand 7, single buffered']
    #allocation14 [shape = 'u8[8192]{0}', space=vmem, size = 0x2000, scoped, tag = 'output window, operand 0']
    %14 = vsyncpa [#allocation6], 0
    %s15 = scalar_lea.sflag [#allocation6], 1
    %16 = vsyncpa %s15, 0
    %17 = vsyncpa [#allocation9], 0
    %18 = vsyncpa [#allocation12], 0
    %19 = vsyncpa [#allocation7], 0
    %s20 = scalar_lea.sflag [#allocation7], 1
    %21 = vsyncpa %s20, 0
    loop: start=0, step=1, limit=4
    $region2: #{tpu_custom_call.1} parent=1 // loop_pre_header
      _
    $region3: #{tpu_custom_call.1} parent=1 // loop_header
      %s23 = sphi 0, %s27
      %p24 = scmp.ge.s32.totalorder %s23, 4
      %s30 = sphi 0, %s42
      %s31 = sphi 0, %s38
      %s32 = sphi 0, %s30
      %s33 = sphi 0, %s31
      %s34 = sphi 0, %s32
      %s35 = sphi 0, %s33
      %s45 = sphi 0, %s47
      %s48 = sphi 0, %s45
      %s49 = sphi 0, %s48
      %s65 = sphi 0, %s49
      %s69 = sphi 0, %s69
      %s71 = sphi 0, %s69
      %s72 = sphi 0, %s71
      %s86 = sphi 0, %s72
      %s90 = sphi 0, %s90
      %s92 = sphi 0, %s90
      %s93 = sphi 0, %s92
      %s107 = sphi 0, %s93
      %s111 = sphi 0, %s111
      %s113 = sphi 0, %s111
      %s114 = sphi 0, %s113
      %s128 = sphi 0, %s114
      %s132 = sphi 0, %s132
      %s134 = sphi 0, %s132
      %s135 = sphi 0, %s134
      %s149 = sphi 0, %s135
      %s153 = sphi 0, %s153
      %s155 = sphi 0, %s153
      %s156 = sphi 0, %s155
      %s170 = sphi 0, %s156
      %s174 = sphi 0, %s174
      %s176 = sphi 0, %s174
      %s177 = sphi 0, %s176
      %s191 = sphi 0, %s177
      %s195 = sphi 0, %s195
      %s197 = sphi 0, %s195
      %s198 = sphi 0, %s197
      %s212 = sphi 0, %s198
      %s216 = sphi 0, %s216
      %s218 = sphi 0, %s216
      %s219 = sphi 0, %s218
      %s233 = sphi 0, %s219
      %s241 = sphi 0, %s243
      %s244 = sphi 0, %s241
      %s245 = sphi 0, %s244
      %s261 = sphi 0, %s245
    $region4: #{tpu_custom_call.1} parent=1 // loop_header_branch
      %26 = sbr.rel (%p24) target = $region8
    $region5: #{tpu_custom_call.1} parent=1 // loop_body
      %s28 = ssub.s32 %s23, 1
      %s29 = ssub.s32 %s23, 2
      %s36 = sadd.s32 1, %s31
      %p37 = scmp.ge.s32.totalorder %s36, 1
      %s38 = scalar_select %p37, 0, %s36
      %s39 = sadd.s32 1, %s30
      %s40 = scalar_select %p37, %s39, %s30
      %p41 = scmp.ge.s32.totalorder %s40, 2
      %s42 = scalar_select %p41, 0, %s40
      %s43 = ssub.s32 %s30, %s42
      %p44 = scmp.eq.s32.totalorder %s43, 0
      %s46 = sadd.s32 %s45, 1
      %s47 = scalar_select %p44, %s45, %s46
      %p50 = pneg %p44
      %p51 = scmp.eq.s32.totalorder %s23, 1
      %p52 = por %p50, %p51
      %p53 = scmp.ne.s32.totalorder %s45, %s48
      %p54 = scmp.eq.s32.totalorder %s23, 0
      %p55 = por %p53, %p54
      %p56 = scmp.ne.s32.totalorder %s45, %s48
      %p57 = scmp.eq.s32.totalorder %s28, 1
      %p58 = por %p56, %p57
      %p59 = scmp.ne.s32.totalorder %s48, %s49
      %p60 = scmp.eq.s32.totalorder %s28, 0
      %p61 = por %p59, %p60
      %p62 = scmp.ne.s32.totalorder %s48, %s49
      %p63 = scmp.eq.s32.totalorder %s29, 1
      %p64 = por %p62, %p63
      %p66 = scmp.ne.s32.totalorder %s49, %s65
      %p67 = scmp.eq.s32.totalorder %s29, 0
      %p68 = por %p66, %p67
      %s70 = sadd.s32 %s69, 1
      %p73 = scmp.eq.s32.totalorder %s23, 1
      %p74 = scmp.ne.s32.totalorder %s69, %s71
      %p75 = scmp.eq.s32.totalorder %s23, 0
      %p76 = por %p74, %p75
      %p77 = scmp.ne.s32.totalorder %s69, %s71
      %p78 = scmp.eq.s32.totalorder %s28, 1
      %p79 = por %p77, %p78
      %p80 = scmp.ne.s32.totalorder %s71, %s72
      %p81 = scmp.eq.s32.totalorder %s28, 0
      %p82 = por %p80, %p81
      %p83 = scmp.ne.s32.totalorder %s71, %s72
      %p84 = scmp.eq.s32.totalorder %s29, 1
      %p85 = por %p83, %p84
      %p87 = scmp.ne.s32.totalorder %s72, %s86
      %p88 = scmp.eq.s32.totalorder %s29, 0
      %p89 = por %p87, %p88
      %s91 = sadd.s32 %s90, 1
      %p94 = scmp.eq.s32.totalorder %s23, 1
      %p95 = scmp.ne.s32.totalorder %s90, %s92
      %p96 = scmp.eq.s32.totalorder %s23, 0
      %p97 = por %p95, %p96
      %p98 = scmp.ne.s32.totalorder %s90, %s92
      %p99 = scmp.eq.s32.totalorder %s28, 1
      %p100 = por %p98, %p99
      %p101 = scmp.ne.s32.totalorder %s92, %s93
      %p102 = scmp.eq.s32.totalorder %s28, 0
      %p103 = por %p101, %p102
      %p104 = scmp.ne.s32.totalorder %s92, %s93
      %p105 = scmp.eq.s32.totalorder %s29, 1
      %p106 = por %p104, %p105
      %p108 = scmp.ne.s32.totalorder %s93, %s107
      %p109 = scmp.eq.s32.totalorder %s29, 0
      %p110 = por %p108, %p109
      %s112 = sadd.s32 %s111, 1
      %p115 = scmp.eq.s32.totalorder %s23, 1
      %p116 = scmp.ne.s32.totalorder %s111, %s113
      %p117 = scmp.eq.s32.totalorder %s23, 0
      %p118 = por %p116, %p117
      %p119 = scmp.ne.s32.totalorder %s111, %s113
      %p120 = scmp.eq.s32.totalorder %s28, 1
      %p121 = por %p119, %p120
      %p122 = scmp.ne.s32.totalorder %s113, %s114
      %p123 = scmp.eq.s32.totalorder %s28, 0
      %p124 = por %p122, %p123
      %p125 = scmp.ne.s32.totalorder %s113, %s114
      %p126 = scmp.eq.s32.totalorder %s29, 1
      %p127 = por %p125, %p126
      %p129 = scmp.ne.s32.totalorder %s114, %s128
      %p130 = scmp.eq.s32.totalorder %s29, 0
      %p131 = por %p129, %p130
      %s133 = sadd.s32 %s132, 1
      %p136 = scmp.eq.s32.totalorder %s23, 1
      %p137 = scmp.ne.s32.totalorder %s132, %s134
      %p138 = scmp.eq.s32.totalorder %s23, 0
      %p139 = por %p137, %p138
      %p140 = scmp.ne.s32.totalorder %s132, %s134
      %p141 = scmp.eq.s32.totalorder %s28, 1
      %p142 = por %p140, %p141
      %p143 = scmp.ne.s32.totalorder %s134, %s135
      %p144 = scmp.eq.s32.totalorder %s28, 0
      %p145 = por %p143, %p144
      %p146 = scmp.ne.s32.totalorder %s134, %s135
      %p147 = scmp.eq.s32.totalorder %s29, 1
      %p148 = por %p146, %p147
      %p150 = scmp.ne.s32.totalorder %s135, %s149
      %p151 = scmp.eq.s32.totalorder %s29, 0
      %p152 = por %p150, %p151
      %s154 = sadd.s32 %s153, 1
      %p157 = scmp.eq.s32.totalorder %s23, 1
      %p158 = scmp.ne.s32.totalorder %s153, %s155
      %p159 = scmp.eq.s32.totalorder %s23, 0
      %p160 = por %p158, %p159
      %p161 = scmp.ne.s32.totalorder %s153, %s155
      %p162 = scmp.eq.s32.totalorder %s28, 1
      %p163 = por %p161, %p162
      %p164 = scmp.ne.s32.totalorder %s155, %s156
      %p165 = scmp.eq.s32.totalorder %s28, 0
      %p166 = por %p164, %p165
      %p167 = scmp.ne.s32.totalorder %s155, %s156
      %p168 = scmp.eq.s32.totalorder %s29, 1
      %p169 = por %p167, %p168
      %p171 = scmp.ne.s32.totalorder %s156, %s170
      %p172 = scmp.eq.s32.totalorder %s29, 0
      %p173 = por %p171, %p172
      %s175 = sadd.s32 %s174, 1
      %p178 = scmp.eq.s32.totalorder %s23, 1
      %p179 = scmp.ne.s32.totalorder %s174, %s176
      %p180 = scmp.eq.s32.totalorder %s23, 0
      %p181 = por %p179, %p180
      %p182 = scmp.ne.s32.totalorder %s174, %s176
      %p183 = scmp.eq.s32.totalorder %s28, 1
      %p184 = por %p182, %p183
      %p185 = scmp.ne.s32.totalorder %s176, %s177
      %p186 = scmp.eq.s32.totalorder %s28, 0
      %p187 = por %p185, %p186
      %p188 = scmp.ne.s32.totalorder %s176, %s177
      %p189 = scmp.eq.s32.totalorder %s29, 1
      %p190 = por %p188, %p189
      %p192 = scmp.ne.s32.totalorder %s177, %s191
      %p193 = scmp.eq.s32.totalorder %s29, 0
      %p194 = por %p192, %p193
      %s196 = sadd.s32 %s195, 1
      %p199 = scmp.eq.s32.totalorder %s23, 1
      %p200 = scmp.ne.s32.totalorder %s195, %s197
      %p201 = scmp.eq.s32.totalorder %s23, 0
      %p202 = por %p200, %p201
      %p203 = scmp.ne.s32.totalorder %s195, %s197
      %p204 = scmp.eq.s32.totalorder %s28, 1
      %p205 = por %p203, %p204
      %p206 = scmp.ne.s32.totalorder %s197, %s198
      %p207 = scmp.eq.s32.totalorder %s28, 0
      %p208 = por %p206, %p207
      %p209 = scmp.ne.s32.totalorder %s197, %s198
      %p210 = scmp.eq.s32.totalorder %s29, 1
      %p211 = por %p209, %p210
      %p213 = scmp.ne.s32.totalorder %s198, %s212
      %p214 = scmp.eq.s32.totalorder %s29, 0
      %p215 = por %p213, %p214
      %s217 = sadd.s32 %s216, 1
      %p220 = scmp.eq.s32.totalorder %s23, 1
      %p221 = scmp.ne.s32.totalorder %s216, %s218
      %p222 = scmp.eq.s32.totalorder %s23, 0
      %p223 = por %p221, %p222
      %p224 = scmp.ne.s32.totalorder %s216, %s218
      %p225 = scmp.eq.s32.totalorder %s28, 1
      %p226 = por %p224, %p225
      %p227 = scmp.ne.s32.totalorder %s218, %s219
      %p228 = scmp.eq.s32.totalorder %s28, 0
      %p229 = por %p227, %p228
      %p230 = scmp.ne.s32.totalorder %s218, %s219
      %p231 = scmp.eq.s32.totalorder %s29, 1
      %p232 = por %p230, %p231
      %p234 = scmp.ne.s32.totalorder %s219, %s233
      %p235 = scmp.eq.s32.totalorder %s29, 0
      %p236 = por %p234, %p235
      %s237 = ssub.s32 %s30, %s42
      %s238 = ssub.s32 %s31, %s38
      %s239 = sor.u32 %s237, %s238
      %p240 = scmp.eq.s32.totalorder %s239, 0
      %s242 = sadd.s32 %s241, 1
      %s243 = scalar_select %p240, %s241, %s242
      %p246 = pneg %p240
      %p247 = scmp.eq.s32.totalorder %s23, 1
      %p248 = por %p246, %p247
      %p249 = scmp.ne.s32.totalorder %s241, %s244
      %p250 = scmp.eq.s32.totalorder %s23, 0
      %p251 = por %p249, %p250
      %p252 = scmp.ne.s32.totalorder %s241, %s244
      %p253 = scmp.eq.s32.totalorder %s28, 1
      %p254 = por %p252, %p253
      %p255 = scmp.ne.s32.totalorder %s244, %s245
      %p256 = scmp.eq.s32.totalorder %s28, 0
      %p257 = por %p255, %p256
      %p258 = scmp.ne.s32.totalorder %s244, %s245
      %p259 = scmp.eq.s32.totalorder %s29, 1
      %p260 = por %p258, %p259
      %p262 = scmp.ne.s32.totalorder %s245, %s261
      %p263 = scmp.eq.s32.totalorder %s29, 0
      %p264 = por %p262, %p263
      %p265 = scmp.le.s32.totalorder 1, %s23
      %p266 = scmp.lt.s32.totalorder %s23, 3
      %p267 = pnand %p265, %p266
      %p268 = pneg %p267
      // Predicated region
      $region9: #{tpu_custom_call.1} parent=5 // pred_check
        _
      $region10: #{tpu_custom_call.1} parent=5 // pred_check_branch
        %270 = sbr.rel (%p267) target = $region12
      $region11: #{tpu_custom_call.1} parent=5 // pred_region
        %s271 = ssub.s32 %s23, 1
        // Predicated region
        $region13: #{tpu_custom_call.1} parent=11 // pred_check
          %p272 = pneg %p82
        $region14: #{tpu_custom_call.1} parent=11 // pred_check_branch
          %274 = sbr.rel (%p272) target = $region16
        $region15: #{tpu_custom_call.1} parent=11 // pred_region
          %276 = vsyncadd [#allocation9], 0
          %s277 = sshll.u32 %s1, 4
          %s278 = int_to_ptr.hbm [resolvable:$true] %s277
          %s279 = sshll.u32 [#allocation8], 4
          %s280 = int_to_ptr.vmem [resolvable:$true] %s279
          %285 = dma.hbm_to_vmem [thread:$0]  %s278, 256, %s280, [#allocation9], 64, 64, 4
        $region16: #{tpu_custom_call.1} parent=11 // pred_fallthru
          _
        // Predicated region
        $region17: #{tpu_custom_call.1} parent=11 // pred_check
          %p286 = pneg %p103
        $region18: #{tpu_custom_call.1} parent=11 // pred_check_branch
          %288 = sbr.rel (%p286) target = $region20
        $region19: #{tpu_custom_call.1} parent=11 // pred_region
          _
        $region20: #{tpu_custom_call.1} parent=11 // pred_fallthru
          _
        // Predicated region
        $region21: #{tpu_custom_call.1} parent=11 // pred_check
          %p289 = pneg %p124
        $region22: #{tpu_custom_call.1} parent=11 // pred_check_branch
          %291 = sbr.rel (%p289) target = $region24
        $region23: #{tpu_custom_call.1} parent=11 // pred_region
          %293 = vsyncadd [#allocation9], 0
          %s294 = sshll.u32 %s3, 4
          %s295 = int_to_ptr.hbm [resolvable:$true] %s294
          %s296 = sshll.u32 [#allocation10], 4
          %s297 = int_to_ptr.vmem [resolvable:$true] %s296
          %302 = dma.hbm_to_vmem [thread:$0]  %s295, 256, %s297, [#allocation9], 64, 64, 4
        $region24: #{tpu_custom_call.1} parent=11 // pred_fallthru
          _
        // Predicated region
        $region25: #{tpu_custom_call.1} parent=11 // pred_check
          %p303 = pneg %p145
        $region26: #{tpu_custom_call.1} parent=11 // pred_check_branch
          %305 = sbr.rel (%p303) target = $region28
        $region27: #{tpu_custom_call.1} parent=11 // pred_region
          _
        $region28: #{tpu_custom_call.1} parent=11 // pred_fallthru
          _
        // Predicated region
        $region29: #{tpu_custom_call.1} parent=11 // pred_check
          %p306 = pneg %p166
        $region30: #{tpu_custom_call.1} parent=11 // pred_check_branch
          %308 = sbr.rel (%p306) target = $region32
        $region31: #{tpu_custom_call.1} parent=11 // pred_region
          %310 = vsyncadd [#allocation12], 0
          %s311 = sshll.u32 %s5, 4
          %s312 = int_to_ptr.hbm [resolvable:$true] %s311
          %s313 = sshll.u32 [#allocation11], 4
          %s314 = int_to_ptr.vmem [resolvable:$true] %s313
          %319 = dma.hbm_to_vmem [thread:$0]  %s312, 256, %s314, [#allocation12], 64, 64, 4
        $region32: #{tpu_custom_call.1} parent=11 // pred_fallthru
          _
        // Predicated region
        $region33: #{tpu_custom_call.1} parent=11 // pred_check
          %p320 = pneg %p187
        $region34: #{tpu_custom_call.1} parent=11 // pred_check_branch
          %322 = sbr.rel (%p320) target = $region36
        $region35: #{tpu_custom_call.1} parent=11 // pred_region
          _
        $region36: #{tpu_custom_call.1} parent=11 // pred_fallthru
          _
        // Predicated region
        $region37: #{tpu_custom_call.1} parent=11 // pred_check
          %p323 = pneg %p208
        $region38: #{tpu_custom_call.1} parent=11 // pred_check_branch
          %325 = sbr.rel (%p323) target = $region40
        $region39: #{tpu_custom_call.1} parent=11 // pred_region
          %327 = vsyncadd [#allocation12], 0
          %s328 = sshll.u32 %s7, 4
          %s329 = int_to_ptr.hbm [resolvable:$true] %s328
          %s330 = sshll.u32 [#allocation13], 4
          %s331 = int_to_ptr.vmem [resolvable:$true] %s330
          %336 = dma.hbm_to_vmem [thread:$0]  %s329, 256, %s331, [#allocation12], 64, 64, 4
        $region40: #{tpu_custom_call.1} parent=11 // pred_fallthru
          _
        // Predicated region
        $region41: #{tpu_custom_call.1} parent=11 // pred_check
          %p337 = pneg %p229
        $region42: #{tpu_custom_call.1} parent=11 // pred_check_branch
          %339 = sbr.rel (%p337) target = $region44
        $region43: #{tpu_custom_call.1} parent=11 // pred_region
          _
        $region44: #{tpu_custom_call.1} parent=11 // pred_fallthru
          _
      $region12: #{tpu_custom_call.1} parent=5 // pred_fallthru
        _
      %p340 = scmp.lt.s32.totalorder %s23, 2
      // Predicated region
      $region45: #{tpu_custom_call.1} parent=5 // pred_check
        %p341 = pneg %p340
      $region46: #{tpu_custom_call.1} parent=5 // pred_check_branch
        %343 = sbr.rel (%p341) target = $region48
      $region47: #{tpu_custom_call.1} parent=5 // pred_region
        // Predicated region
        $region49: #{tpu_custom_call.1} parent=47 // pred_check
          %p344 = pneg %p55
        $region50: #{tpu_custom_call.1} parent=47 // pred_check_branch
          %346 = sbr.rel (%p344) target = $region52
        $region51: #{tpu_custom_call.1} parent=47 // pred_region
          %s347 = sand.u32 %s45, 1
          %s348 = scalar_lea.sflag [#allocation6], %s347
          %s349 = sand.u32 %s45, 1
          %s350 = smul.addr %s349, 4
          %s351 = scalar_lea.vmem [#allocation5], %s350
          %353 = vsyncadd %s348, 0
          %s354 = smul.addr %s30, 4
          %s355 = scalar_lea.hbm %s0, %s354
          %s357 = sshll.u32 %s355, 4
          %s358 = int_to_ptr.hbm [resolvable:$true] %s357
          %s359 = sshll.u32 %s351, 4
          %s360 = int_to_ptr.vmem [resolvable:$true] %s359
          %362 = dma.hbm_to_vmem [thread:$0]  %s358, 64, %s360, %s348
        $region52: #{tpu_custom_call.1} parent=47 // pred_fallthru
          _
      $region48: #{tpu_custom_call.1} parent=5 // pred_fallthru
        _
      %p363 = scmp.le.s32.totalorder 1, %s23
      %p364 = scmp.lt.s32.totalorder %s23, 3
      %p365 = pnand %p363, %p364
      %p366 = pneg %p365
      // Predicated region
      $region53: #{tpu_custom_call.1} parent=5 // pred_check
        _
      $region54: #{tpu_custom_call.1} parent=5 // pred_check_branch
        %368 = sbr.rel (%p365) target = $region56
      $region55: #{tpu_custom_call.1} parent=5 // pred_region
        %s369 = ssub.s32 %s23, 1
        %s370 = sand.u32 %s48, 1
        %s371 = scalar_lea.sflag [#allocation6], %s370
        %s372 = sand.u32 %s48, 1
        %s373 = smul.addr %s372, 4
        %s374 = scalar_lea.vmem [#allocation5], %s373
        // Predicated region
        $region57: #{tpu_custom_call.1} parent=55 // pred_check
          %p375 = pneg %p61
        $region58: #{tpu_custom_call.1} parent=55 // pred_check_branch
          %377 = sbr.rel (%p375) target = $region60
        $region59: #{tpu_custom_call.1} parent=55 // pred_region
          %379 = dma.done %s371, 64
        $region60: #{tpu_custom_call.1} parent=55 // pred_fallthru
          _
        // Predicated region
        $region61: #{tpu_custom_call.1} parent=55 // pred_check
          %p380 = pneg %p82
        $region62: #{tpu_custom_call.1} parent=55 // pred_check_branch
          %382 = sbr.rel (%p380) target = $region64
        $region63: #{tpu_custom_call.1} parent=55 // pred_region
          %384 = dma.done [#allocation9], 256
        $region64: #{tpu_custom_call.1} parent=55 // pred_fallthru
          _
        // Predicated region
        $region65: #{tpu_custom_call.1} parent=55 // pred_check
          %p385 = pneg %p124
        $region66: #{tpu_custom_call.1} parent=55 // pred_check_branch
          %387 = sbr.rel (%p385) target = $region68
        $region67: #{tpu_custom_call.1} parent=55 // pred_region
          %389 = dma.done [#allocation9], 256
        $region68: #{tpu_custom_call.1} parent=55 // pred_fallthru
          _
        // Predicated region
        $region69: #{tpu_custom_call.1} parent=55 // pred_check
          %p390 = pneg %p166
        $region70: #{tpu_custom_call.1} parent=55 // pred_check_branch
          %392 = sbr.rel (%p390) target = $region72
        $region71: #{tpu_custom_call.1} parent=55 // pred_region
          %394 = dma.done [#allocation12], 256
        $region72: #{tpu_custom_call.1} parent=55 // pred_fallthru
          _
        // Predicated region
        $region73: #{tpu_custom_call.1} parent=55 // pred_check
          %p395 = pneg %p208
        $region74: #{tpu_custom_call.1} parent=55 // pred_check_branch
          %397 = sbr.rel (%p395) target = $region76
        $region75: #{tpu_custom_call.1} parent=55 // pred_region
          %399 = dma.done [#allocation12], 256
        $region76: #{tpu_custom_call.1} parent=55 // pred_fallthru
          _
        %s400 = sand.u32 %s48, 1
        %s401 = scalar_lea.sflag [#allocation6], %s400
        %s402 = sand.u32 %s48, 1
        %s403 = smul.addr %s402, 4
        %s404 = scalar_lea.vmem [#allocation5], %s403
        %p405 = pneg %p61
        %p406 = pneg %p58
        %p407 = pneg %p82
        %p408 = pneg %p79
        %p409 = pneg %p103
        %p410 = pneg %p100
        %p411 = pneg %p124
        %p412 = pneg %p121
        %p413 = pneg %p145
        %p414 = pneg %p142
        %p415 = pneg %p166
        %p416 = pneg %p163
        %p417 = pneg %p187
        %p418 = pneg %p184
        %p419 = pneg %p208
        %p420 = pneg %p205
        %p421 = pneg %p229
        %p422 = pneg %p226
        %p423 = pneg %p257
        %p424 = pneg %p254
        %s425 = sand.u32 %s244, 1
        %s426 = scalar_lea.sflag [#allocation7], %s425
        %s427 = sand.u32 %s244, 1
        %s428 = smul.addr %s427, 8
        %s429 = scalar_lea.vmem [#allocation14], %s428
        %p431 = scmp.eq.s32.totalorder %s33, 0
        // Predicated region
        $region77: #{tpu_custom_call.1} parent=55 // pred_check
          %p432 = pneg %p431
        $region78: #{tpu_custom_call.1} parent=55 // pred_check_branch
          %434 = sbr.rel (%p432) target = $region80
        $region79: #{tpu_custom_call.1} parent=55 // pred_region
          %v435 = vld [vmem:[%s374] sm:$0xf]
          %v436 = vld [vmem:[#allocation10] sm:$0xf]
          %v437 = vld [vmem:[#allocation10 + $0x4] sm:$0xf]
          %v438 = vld [vmem:[#allocation10 + $0x8] sm:$0xf]
          %v439 = vld [vmem:[#allocation10 + $0xc] sm:$0xf]
          %v440 = vld [vmem:[%s4] sm:$0x1]
          %v442 = vperm.slane %v440, 0
          %v448 = vunpack.c.l.b16 %v436
          %v449 = vunpack.c.l.b16 %v437
          %v450 = vunpack.c.l.b16 %v438
          %v451 = vunpack.c.l.b16 %v439
          %v452 = vpack.c.b16 %v449, %v448
          %v453 = vpack.c.b16 %v451, %v450
          %vm456 = vcmask 261120
          %v458 = vsel %vm456, %v435, 0
          %460 = vmatpush.bf16.msra.mxu0 0
          %461 = vmatpush.bf16.msra.mxu0 0
          %462 = vmatpush.bf16.msra.mxu0 0
          %463 = vmatpush.bf16.msra.mxu0 0
          %464 = vmatpush.bf16.msra.mxu0 0
          %465 = vmatpush.bf16.msra.mxu0 0
          %466 = vmatpush.bf16.msra.mxu0 %v453
          %467 = vmatpush.bf16.msra.mxu0 %v452
          %468 = vmatmul.bf16.gmra.mxu0 %v458
          %v469 = vpop.f32.mrf.mxu0
          %v470 = vadd.f32 %v442, %v469
          %v471 = vpop.f32.mrf.mxu0
          %472 = vdwg.mxu0
          %v473 = vld [vmem:[#allocation11] sm:$0xf]
          %v474 = vld [vmem:[#allocation11 + $0x4] sm:$0xf]
          %v475 = vld [vmem:[#allocation11 + $0x8] sm:$0xf]
          %v476 = vld [vmem:[#allocation11 + $0xc] sm:$0xf]
          %v477 = vld [vmem:[%s6] sm:$0x1]
          %v479 = vperm.slane %v477, 0
          %v485 = vunpack.c.l.b16 %v473
          %v486 = vunpack.c.l.b16 %v474
          %v487 = vunpack.c.l.b16 %v475
          %v488 = vunpack.c.l.b16 %v476
          %v489 = vpack.c.b16 %v486, %v485
          %v490 = vpack.c.b16 %v488, %v487
          %493 = vmatpush.bf16.msra.mxu0 0
          %494 = vmatpush.bf16.msra.mxu0 0
          %495 = vmatpush.bf16.msra.mxu0 0
          %496 = vmatpush.bf16.msra.mxu0 0
          %497 = vmatpush.bf16.msra.mxu0 0
          %498 = vmatpush.bf16.msra.mxu0 0
          %499 = vmatpush.bf16.msra.mxu0 %v490
          %500 = vmatpush.bf16.msra.mxu0 %v489
          %501 = vmatmul.bf16.gmra.mxu0 %v458
          %v502 = vpop.f32.mrf.mxu0
          %v503 = vadd.f32 %v479, %v502
          %v504 = vpop.f32.mrf.mxu0
          %505 = vdwg.mxu0
          %v506 = vpack.c.bf16 %v470, %v470
          %vm507 = vcmask 257024
          %508 = vst.msk [vmem:[#allocation2] sm:$0xf] %vm507, %v506
          %v509 = vpack.c.bf16 %v503, %v503
          %510 = vst.msk [vmem:[#allocation3] sm:$0xf] %vm507, %v509
        $region80: #{tpu_custom_call.1} parent=55 // pred_fallthru
          _
        %s511 = smul.u32 %s33, 8
        %s512 = sshra.s32 %s511, 3
        %s513 = sand.u32 %s511, 7
        %s514 = smul.addr %s512, 4
        %s515 = scalar_lea.vmem %s374, %s514 [#allocation5]
        %v516 = vld [vmem:[%s515] sm:$0xf]
        %v517 = vld [vmem:[#allocation8] sm:$0xf]
        %v518 = vld [vmem:[#allocation8 + $0x4] sm:$0xf]
        %v519 = vld [vmem:[#allocation8 + $0x8] sm:$0xf]
        %v520 = vld [vmem:[#allocation8 + $0xc] sm:$0xf]
        %v521 = vld [vmem:[%s2] sm:$0x1]
        %v523 = vperm.slane %v521, 0
        %v529 = vunpack.c.l.b16 %v517
        %v530 = vunpack.c.l.b16 %v518
        %v531 = vunpack.c.l.b16 %v519
        %v532 = vunpack.c.l.b16 %v520
        %v533 = vpack.c.b16 %v530, %v529
        %v534 = vpack.c.b16 %v532, %v531
        %vm537 = vcmask 261120
        %v539 = vsel %vm537, %v516, 0
        %541 = vmatpush.bf16.msra.mxu0 0
        %542 = vmatpush.bf16.msra.mxu0 0
        %543 = vmatpush.bf16.msra.mxu0 0
        %544 = vmatpush.bf16.msra.mxu0 0
        %545 = vmatpush.bf16.msra.mxu0 0
        %546 = vmatpush.bf16.msra.mxu0 0
        %547 = vmatpush.bf16.msra.mxu0 %v534
        %548 = vmatpush.bf16.msra.mxu0 %v533
        %549 = vmatmul.bf16.gmra.mxu0 %v539
        %v550 = vpop.f32.mrf.mxu0
        %v551 = vadd.f32 %v523, %v550
        %v552 = vpop.f32.mrf.mxu0
        %553 = vdwg.mxu0
        %v554 = vpack.c.bf16 %v551, %v551
        %v555 = vld [vmem:[#allocation2] sm:$0xf]
        %v556 = vld [vmem:[#allocation3] sm:$0xf]
        %vm557 = vcmask 64512
        %v559 = vsel %vm557, %v554, 0
        %v562 = vsel %vm557, %v555, 0
        %564 = vmatpush.bf16.xpose.msra.mxu0 0
        %565 = vmatpush.bf16.xpose.msra.mxu0 0
        %566 = vmatpush.bf16.xpose.msra.mxu0 0
        %567 = vmatpush.bf16.xpose.msra.mxu0 0
        %568 = vmatpush.bf16.xpose.msra.mxu0 0
        %569 = vmatpush.bf16.xpose.msra.mxu0 0
        %570 = vmatpush.bf16.xpose.msra.mxu0 0
        %571 = vmatpush.bf16.xpose.msra.mxu0 %v562
        %572 = vmatmul.bf16.gmra.mxu0 %v559
        %v573 = vpop.f32.mrf.mxu0
        %v574 = vadd.f32 0.0, %v573
        %v575 = vpop.f32.mrf.mxu0
        %576 = vdwg.mxu0
        %v577 = vsel %vm557, %v574, -inf
        %578 = vmax.xlane.f32.xlu0 %v577
        %v579 = vpop.xlane.xlu0 %578
        %v580 = vsub.f32 %v574, %v579
        %v581 = vmul.f32 %v580, 1.442695
        %v582 = vpow.pop %v581
        %v583 = vsel %vm557, %v582, 0.0
        %584 = vadd.xlane.f32.xlu0 %v583
        %v585 = vpop.xlane.xlu0 %584
        %v586 = vrcp.pop %v585
        %v587 = vmul.f32 %v582, %v586
        %v588 = vpack.c.bf16 %v587, %v587
        %v590 = vsel %vm557, %v588, 0
        %vm592 = vcmask 1043456
        %v594 = vsel %vm592, %v556, 0
        %596 = vmatpush.bf16.msra.mxu0 0
        %597 = vmatpush.bf16.msra.mxu0 0
        %598 = vmatpush.bf16.msra.mxu0 0
        %599 = vmatpush.bf16.msra.mxu0 0
        %600 = vmatpush.bf16.msra.mxu0 0
        %601 = vmatpush.bf16.msra.mxu0 0
        %602 = vmatpush.bf16.msra.mxu0 0
        %603 = vmatpush.bf16.msra.mxu0 %v594
        %604 = vmatmul.bf16.gmra.mxu0 %v590
        %v605 = vpop.f32.mrf.mxu0
        %v606 = vadd.f32 0.0, %v605
        %v607 = vpop.f32.mrf.mxu0
        %608 = vdwg.mxu0
        %v609 = vpack.c.bf16 %v606, %v606
        %vm610 = vcmask 60416
        %611 = vst.msk [vmem:[#allocation4] sm:$0xf] %vm610, %v609
        %v612 = vld [vmem:[#allocation2] sm:$0xf]
        %v613 = vld [vmem:[#allocation3] sm:$0xf]
        %v615 = vunpack.c.l.b16 %v554
        %v616 = vpack.c.b16 %v615, %v615
        %617 = vrot.lane.b32.xlu0 %v616, 120
        %v618 = vpop.permute.xlu0 %617
        %v620 = vunpack.c.l.b16 %v612
        %v621 = vpack.c.b16 %v620, %v620
        %622 = vrot.lane.b32.xlu0 %v621, 120
        %v623 = vpop.permute.xlu0 %622
        %v625 = vsel %vm557, %v618, 0
        %v628 = vsel %vm557, %v623, 0
        %630 = vmatpush.bf16.xpose.msra.mxu0 0
        %631 = vmatpush.bf16.xpose.msra.mxu0 0
        %632 = vmatpush.bf16.xpose.msra.mxu0 0
        %633 = vmatpush.bf16.xpose.msra.mxu0 0
        %634 = vmatpush.bf16.xpose.msra.mxu0 0
        %635 = vmatpush.bf16.xpose.msra.mxu0 0
        %636 = vmatpush.bf16.xpose.msra.mxu0 0
        %637 = vmatpush.bf16.xpose.msra.mxu0 %v628
        %638 = vmatmul.bf16.gmra.mxu0 %v625
        %v639 = vpop.f32.mrf.mxu0
        %v640 = vadd.f32 0.0, %v639
        %v641 = vpop.f32.mrf.mxu0
        %642 = vdwg.mxu0
        %v643 = vsel %vm557, %v640, -inf
        %644 = vmax.xlane.f32.xlu0 %v643
        %v645 = vpop.xlane.xlu0 %644
        %v646 = vsub.f32 %v640, %v645
        %v647 = vmul.f32 %v646, 1.442695
        %v648 = vpow.pop %v647
        %v649 = vsel %vm557, %v648, 0.0
        %650 = vadd.xlane.f32.xlu0 %v649
        %v651 = vpop.xlane.xlu0 %650
        %v652 = vrcp.pop %v651
        %v653 = vmul.f32 %v648, %v652
        %v654 = vpack.c.bf16 %v653, %v653
        %v656 = vunpack.c.l.b16 %v613
        %v657 = vpack.c.b16 %v656, %v656
        %658 = vrot.lane.b32.xlu0 %v657, 120
        %v659 = vpop.permute.xlu0 %658
        %v661 = vsel %vm557, %v654, 0
        %v664 = vsel %vm592, %v659, 0
        %666 = vmatpush.bf16.msra.mxu0 0
        %667 = vmatpush.bf16.msra.mxu0 0
        %668 = vmatpush.bf16.msra.mxu0 0
        %669 = vmatpush.bf16.msra.mxu0 0
        %670 = vmatpush.bf16.msra.mxu0 0
        %671 = vmatpush.bf16.msra.mxu0 0
        %672 = vmatpush.bf16.msra.mxu0 0
        %673 = vmatpush.bf16.msra.mxu0 %v664
        %674 = vmatmul.bf16.gmra.mxu0 %v661
        %v675 = vpop.f32.mrf.mxu0
        %v676 = vadd.f32 0.0, %v675
        %v677 = vpop.f32.mrf.mxu0
        %678 = vdwg.mxu0
        %v679 = vpack.c.bf16 %v676, %v676
        %681 = vrot.lane.b32.xlu0 %v679, 8
        %v682 = vpop.permute.xlu0 %681
        %vm684 = vcmask 126016
        %685 = vst.msk [vmem:[#allocation4] sm:$0xf] %vm684, %v682
        %v686 = vld [vmem:[#allocation2] sm:$0xf]
        %v687 = vld [vmem:[#allocation3] sm:$0xf]
        %688 = vrot.lane.b32.xlu0 %v616, 112
        %v689 = vpop.permute.xlu0 %688
        %v691 = vunpack.c.l.b16 %v686
        %v692 = vpack.c.b16 %v691, %v691
        %693 = vrot.lane.b32.xlu0 %v692, 112
        %v694 = vpop.permute.xlu0 %693
        %v696 = vsel %vm557, %v689, 0
        %v699 = vsel %vm557, %v694, 0
        %701 = vmatpush.bf16.xpose.msra.mxu0 0
        %702 = vmatpush.bf16.xpose.msra.mxu0 0
        %703 = vmatpush.bf16.xpose.msra.mxu0 0
        %704 = vmatpush.bf16.xpose.msra.mxu0 0
        %705 = vmatpush.bf16.xpose.msra.mxu0 0
        %706 = vmatpush.bf16.xpose.msra.mxu0 0
        %707 = vmatpush.bf16.xpose.msra.mxu0 0
        %708 = vmatpush.bf16.xpose.msra.mxu0 %v699
        %709 = vmatmul.bf16.gmra.mxu0 %v696
        %v710 = vpop.f32.mrf.mxu0
        %v711 = vadd.f32 0.0, %v710
        %v712 = vpop.f32.mrf.mxu0
        %713 = vdwg.mxu0
        %v714 = vsel %vm557, %v711, -inf
        %715 = vmax.xlane.f32.xlu0 %v714
        %v716 = vpop.xlane.xlu0 %715
        %v717 = vsub.f32 %v711, %v716
        %v718 = vmul.f32 %v717, 1.442695
        %v719 = vpow.pop %v718
        %v720 = vsel %vm557, %v719, 0.0
        %721 = vadd.xlane.f32.xlu0 %v720
        %v722 = vpop.xlane.xlu0 %721
        %v723 = vrcp.pop %v722
        %v724 = vmul.f32 %v719, %v723
        %v725 = vpack.c.bf16 %v724, %v724
        %v727 = vunpack.c.l.b16 %v687
        %v728 = vpack.c.b16 %v727, %v727
        %729 = vrot.lane.b32.xlu0 %v728, 112
        %v730 = vpop.permute.xlu0 %729
        %v732 = vsel %vm557, %v725, 0
        %v735 = vsel %vm592, %v730, 0
        %737 = vmatpush.bf16.msra.mxu0 0
        %738 = vmatpush.bf16.msra.mxu0 0
        %739 = vmatpush.bf16.msra.mxu0 0
        %740 = vmatpush.bf16.msra.mxu0 0
        %741 = vmatpush.bf16.msra.mxu0 0
        %742 = vmatpush.bf16.msra.mxu0 0
        %743 = vmatpush.bf16.msra.mxu0 0
        %744 = vmatpush.bf16.msra.mxu0 %v735
        %745 = vmatmul.bf16.gmra.mxu0 %v732
        %v746 = vpop.f32.mrf.mxu0
        %v747 = vadd.f32 0.0, %v746
        %v748 = vpop.f32.mrf.mxu0
        %749 = vdwg.mxu0
        %v750 = vpack.c.bf16 %v747, %v747
        %752 = vrot.lane.b32.xlu0 %v750, 16
        %v753 = vpop.permute.xlu0 %752
        %vm755 = vcmask 191616
        %756 = vst.msk [vmem:[#allocation4] sm:$0xf] %vm755, %v753
        %v757 = vld [vmem:[#allocation2] sm:$0xf]
        %v758 = vld [vmem:[#allocation3] sm:$0xf]
        %759 = vrot.lane.b32.xlu0 %v616, 104
        %v760 = vpop.permute.xlu0 %759
        %v762 = vunpack.c.l.b16 %v757
        %v763 = vpack.c.b16 %v762, %v762
        %764 = vrot.lane.b32.xlu0 %v763, 104
        %v765 = vpop.permute.xlu0 %764
        %v767 = vsel %vm557, %v760, 0
        %v770 = vsel %vm557, %v765, 0
        %772 = vmatpush.bf16.xpose.msra.mxu0 0
        %773 = vmatpush.bf16.xpose.msra.mxu0 0
        %774 = vmatpush.bf16.xpose.msra.mxu0 0
        %775 = vmatpush.bf16.xpose.msra.mxu0 0
        %776 = vmatpush.bf16.xpose.msra.mxu0 0
        %777 = vmatpush.bf16.xpose.msra.mxu0 0
        %778 = vmatpush.bf16.xpose.msra.mxu0 0
        %779 = vmatpush.bf16.xpose.msra.mxu0 %v770
        %780 = vmatmul.bf16.gmra.mxu0 %v767
        %v781 = vpop.f32.mrf.mxu0
        %v782 = vadd.f32 0.0, %v781
        %v783 = vpop.f32.mrf.mxu0
        %784 = vdwg.mxu0
        %v785 = vsel %vm557, %v782, -inf
        %786 = vmax.xlane.f32.xlu0 %v785
        %v787 = vpop.xlane.xlu0 %786
        %v788 = vsub.f32 %v782, %v787
        %v789 = vmul.f32 %v788, 1.442695
        %v790 = vpow.pop %v789
        %v791 = vsel %vm557, %v790, 0.0
        %792 = vadd.xlane.f32.xlu0 %v791
        %v793 = vpop.xlane.xlu0 %792
        %v794 = vrcp.pop %v793
        %v795 = vmul.f32 %v790, %v794
        %v796 = vpack.c.bf16 %v795, %v795
        %v798 = vunpack.c.l.b16 %v758
        %v799 = vpack.c.b16 %v798, %v798
        %800 = vrot.lane.b32.xlu0 %v799, 104
        %v801 = vpop.permute.xlu0 %800
        %v803 = vsel %vm557, %v796, 0
        %v806 = vsel %vm592, %v801, 0
        %808 = vmatpush.bf16.msra.mxu0 0
        %809 = vmatpush.bf16.msra.mxu0 0
        %810 = vmatpush.bf16.msra.mxu0 0
        %811 = vmatpush.bf16.msra.mxu0 0
        %812 = vmatpush.bf16.msra.mxu0 0
        %813 = vmatpush.bf16.msra.mxu0 0
        %814 = vmatpush.bf16.msra.mxu0 0
        %815 = vmatpush.bf16.msra.mxu0 %v806
        %816 = vmatmul.bf16.gmra.mxu0 %v803
        %v817 = vpop.f32.mrf.mxu0
        %v818 = vadd.f32 0.0, %v817
        %v819 = vpop.f32.mrf.mxu0
        %820 = vdwg.mxu0
        %v821 = vpack.c.bf16 %v818, %v818
        %823 = vrot.lane.b32.xlu0 %v821, 24
        %v824 = vpop.permute.xlu0 %823
        %vm826 = vcmask 257216
        %827 = vst.msk [vmem:[#allocation4] sm:$0xf] %vm826, %v824
        %v828 = vld [vmem:[#allocation4] sm:$0xf]
        %v829 = vld [vmem:[#allocation13] sm:$0xf]
        %v830 = vld [vmem:[#allocation13 + $0x4] sm:$0xf]
        %v831 = vld [vmem:[#allocation13 + $0x8] sm:$0xf]
        %v832 = vld [vmem:[#allocation13 + $0xc] sm:$0xf]
        %v833 = vld [vmem:[%s8] sm:$0x1]
        %v835 = vperm.slane %v833, 0
        %v841 = vunpack.c.l.b16 %v829
        %v842 = vunpack.c.l.b16 %v830
        %v843 = vunpack.c.l.b16 %v831
        %v844 = vunpack.c.l.b16 %v832
        %v845 = vpack.c.b16 %v842, %v841
        %v846 = vpack.c.b16 %v844, %v843
        %v850 = vsel %vm537, %v828, 0
        %852 = vmatpush.bf16.msra.mxu0 0
        %853 = vmatpush.bf16.msra.mxu0 0
        %854 = vmatpush.bf16.msra.mxu0 0
        %855 = vmatpush.bf16.msra.mxu0 0
        %856 = vmatpush.bf16.msra.mxu0 0
        %857 = vmatpush.bf16.msra.mxu0 0
        %858 = vmatpush.bf16.msra.mxu0 %v846
        %859 = vmatpush.bf16.msra.mxu0 %v845
        %860 = vmatmul.bf16.gmra.mxu0 %v850
        %v861 = vpop.f32.mrf.mxu0
        %v862 = vadd.f32 %v835, %v861
        %v863 = vpop.f32.mrf.mxu0
        %864 = vdwg.mxu0
        %865 = vst.msk [vmem:[%s429] sm:$0xff] %vm537, %v862
        %s866 = sand.u32 %s244, 1
        %s867 = scalar_lea.sflag [#allocation7], %s866
        %s868 = sand.u32 %s244, 1
        %s869 = smul.addr %s868, 8
        %s870 = scalar_lea.vmem [#allocation14], %s869
        // Predicated region
        $region81: #{tpu_custom_call.1} parent=55 // pred_check
          %p871 = pneg %p254
        $region82: #{tpu_custom_call.1} parent=55 // pred_check_branch
          %873 = sbr.rel (%p871) target = $region84
        $region83: #{tpu_custom_call.1} parent=55 // pred_region
          %875 = vsyncadd %s867, 0
          %s876 = sadd.s32 %s33, %s32
          %s877 = smul.addr %s876, 8
          %s878 = scalar_lea.hbm %s9, %s877
          %s880 = sshll.u32 %s870, 4
          %s881 = int_to_ptr.vmem [resolvable:$true] %s880
          %s882 = sshll.u32 %s878, 4
          %s883 = int_to_ptr.hbm [resolvable:$true] %s882
          %885 = dma.vmem_to_hbm [thread:$0]  %s881, 128, %s883, %s867
        $region84: #{tpu_custom_call.1} parent=55 // pred_fallthru
          _
      $region56: #{tpu_custom_call.1} parent=5 // pred_fallthru
        _
      %p886 = scmp.le.s32.totalorder 2, %s23
      // Predicated region
      $region85: #{tpu_custom_call.1} parent=5 // pred_check
        %p887 = pneg %p886
      $region86: #{tpu_custom_call.1} parent=5 // pred_check_branch
        %889 = sbr.rel (%p887) target = $region88
      $region87: #{tpu_custom_call.1} parent=5 // pred_region
        %s890 = ssub.s32 %s23, 2
        // Predicated region
        $region89: #{tpu_custom_call.1} parent=87 // pred_check
          %p891 = pneg %p260
        $region90: #{tpu_custom_call.1} parent=87 // pred_check_branch
          %893 = sbr.rel (%p891) target = $region92
        $region91: #{tpu_custom_call.1} parent=87 // pred_region
          %s894 = sand.u32 %s245, 1
          %s895 = scalar_lea.sflag [#allocation7], %s894
          %s896 = sand.u32 %s245, 1
          %s897 = smul.addr %s896, 8
          %s898 = scalar_lea.vmem [#allocation14], %s897
          %900 = dma.done %s895, 128
        $region92: #{tpu_custom_call.1} parent=87 // pred_fallthru
          _
      $region88: #{tpu_custom_call.1} parent=5 // pred_fallthru
        _
    $region6: #{tpu_custom_call.1} parent=1 // loop_footer
      %s27 = sadd.s32 1, %s23
    $region7: #{tpu_custom_call.1} parent=1 // loop_footer_branch
      %22 = sbr.rel target = $region3
    $region8: #{tpu_custom_call.1} parent=1 // loop_exit
      _
    %901 = vsyncpa [#allocation6], 1
    %s902 = scalar_lea.sflag [#allocation6], 1
    %903 = vsyncpa %s902, 1
    %904 = vsyncpa [#allocation9], 1
    %905 = vsyncpa [#allocation12], 1
    %906 = vsyncpa [#allocation7], 1
    %s907 = scalar_lea.sflag [#allocation7], 1
    %908 = vsyncpa %s907, 1

</llo_original>
